<compile_context>
chip_gen: v7x
topology: tpu7x:2x2x1
jax: 0.10.0
libtpu: 0.0.40
codegen_flags: <defaults>
</compile_context>

<pallas_src>
import functools
import math

import jax
import jax.numpy as jnp
from jax.experimental import pallas as pl
from jax.experimental.pallas import tpu as pltpu


def _pick_tile(n, target=256):
    """Largest divisor of n that is <= target and a multiple of 8 (else n)."""
    if n <= target:
        return n
    for t in range(target, 7, -1):
        if n % t == 0 and t % 8 == 0:
            return t
    return n


# --------------------- Kernel 1: fused Q/K/V linear projections ---------------------

def _qkv_proj_kernel(q_ref, k_ref, v_ref,
                     wq_ref, bq_ref, wk_ref, bk_ref, wv_ref, bv_ref,
                     qp_ref, kp_ref, vp_ref, *, scale):
    # Blocks: q/k/v (1, tR, H) f32; weights (H, H) bf16; biases (1, H) f32.
    q = q_ref[0].astype(jnp.bfloat16)
    k = k_ref[0].astype(jnp.bfloat16)
    v = v_ref[0].astype(jnp.bfloat16)

    qp = jnp.dot(q, wq_ref[...], preferred_element_type=jnp.float32) + bq_ref[...]
    kp = jnp.dot(k, wk_ref[...], preferred_element_type=jnp.float32) + bk_ref[...]
    vp = jnp.dot(v, wv_ref[...], preferred_element_type=jnp.float32) + bv_ref[...]

    # Fold the 1/sqrt(head_dim) attention scale into Qp (O(L*H) work, not O(L*L)).
    qp_ref[0] = (qp * scale).astype(jnp.bfloat16)
    kp_ref[0] = kp.astype(jnp.bfloat16)
    vp_ref[0] = vp.astype(jnp.bfloat16)


# --------- Kernel 2: flash attention (online softmax) + fused output projection ---------

def _flash_attn_kernel(q_ref, k_ref, v_ref, wo_ref, bo_ref, o_ref,
                       m_sc, l_sc, acc_sc):
    ki = pl.program_id(2)

    @pl.when(ki == 0)
    def _():
        m_sc[...] = jnp.full_like(m_sc, -jnp.inf)
        l_sc[...] = jnp.zeros_like(l_sc)
        acc_sc[...] = jnp.zeros_like(acc_sc)

    q = q_ref[0]   # (heads, tQ, hd) bf16, pre-scaled by 1/sqrt(hd)
    k = k_ref[0]   # (heads, tK, hd) bf16
    v = v_ref[0]   # (heads, tK, hd) bf16

    # Batched-over-heads scores for this (q-tile, kv-tile): (heads, tQ, tK) f32.
    s = jnp.einsum("hqd,hkd->hqk", q, k, preferred_element_type=jnp.float32)

    m_prev = m_sc[...]
    m_new = jnp.maximum(m_prev, s.max(axis=-1, keepdims=True))
    alpha = jnp.exp(m_prev - m_new)
    p = jnp.exp(s - m_new)
    l_sc[...] = alpha * l_sc[...] + p.sum(axis=-1, keepdims=True)
    acc_sc[...] = alpha * acc_sc[...] + jnp.einsum(
        "hqk,hkd->hqd", p.astype(v.dtype), v, preferred_element_type=jnp.float32)
    m_sc[...] = m_new

    @pl.when(ki == pl.num_programs(2) - 1)
    def _():
        # Normalize (EUP reciprocal) and fuse the output projection:
        #   out = sum_h ctx_h @ Wo[h*hd:(h+1)*hd, :] + bo   (no head concat).
        ctx = acc_sc[...] * pl.reciprocal(l_sc[...], approx=True)   # (heads, tQ, hd)
        proj = jnp.einsum("hqd,hdo->hqo", ctx.astype(jnp.bfloat16), wo_ref[...],
                          preferred_element_type=jnp.float32)       # (heads, tQ, H)
        o_ref[0] = (proj.sum(axis=0) + bo_ref[...]).astype(o_ref.dtype)


# ------------------------------------ Wrapper ------------------------------------

def multi_head_attention(Q, K, V, params, *, head_num,
                         q_tile=256, kv_tile=256, row_tile=256):
    # TODO(synk): optional attention mask (mask is not None) and cross-attention
    # with a different K/V sequence length are not implemented.
    B, L, H = Q.shape
    assert K.shape == (B, L, H) and V.shape == (B, L, H)
    assert H % head_num == 0, "hidden_dim must be divisible by head_num"
    hd = H // head_num
    scale = 1.0 / math.sqrt(hd)

    wq, bq, wk, bk, wv, bv, wo, bo = params
    # bf16 MXU operands (accumulation stays f32 inside the kernels).
    wq_b, wk_b, wv_b = (w.astype(jnp.bfloat16) for w in (wq, wk, wv))
    wo_b = wo.reshape(head_num, hd, H).astype(jnp.bfloat16)   # per-head slabs of Wo
    bq2, bk2, bv2, bo2 = (b.reshape(1, H).astype(jnp.float32)
                          for b in (bq, bk, bv, bo))

    vmem_cap = 64 * 1024 * 1024  # raise above the scoped default (esp. v5e 16 MiB)

    # ---- Pass 1: fused Q/K/V linear projections (bf16 out, Q pre-scaled). ----
    tR = _pick_tile(L, row_tile)
    seq_spec = pl.BlockSpec((1, tR, H), lambda b, r: (b, r, 0))
    w_spec = pl.BlockSpec((H, H), lambda b, r: (0, 0))
    b_spec = pl.BlockSpec((1, H), lambda b, r: (0, 0))
    proj_out = jax.ShapeDtypeStruct((B, L, H), jnp.bfloat16)

    qp, kp, vp = pl.pallas_call(
        functools.partial(_qkv_proj_kernel, scale=scale),
        out_shape=(proj_out, proj_out, proj_out),
        grid_spec=pltpu.PrefetchScalarGridSpec(
            num_scalar_prefetch=0,
            grid=(B, L // tR),
            in_specs=[seq_spec, seq_spec, seq_spec,
                      w_spec, b_spec, w_spec, b_spec, w_spec, b_spec],
            out_specs=[seq_spec, seq_spec, seq_spec],
        ),
        compiler_params=pltpu.CompilerParams(
            dimension_semantics=("parallel", "parallel"),
            vmem_limit_bytes=vmem_cap),
    )(Q, K, V, wq_b, bq2, wk_b, bk2, wv_b, bv2)

    # Head split as a plain XLA layout op between the two kernels:
    # (B, L, H) -> (B, heads, L, hd); keeps every in-kernel block lane-natural.
    def split_heads(x):
        return x.reshape(B, L, head_num, hd).transpose(0, 2, 1, 3)

    qh, kh, vh = split_heads(qp), split_heads(kp), split_heads(vp)

    # ---- Pass 2: flash attention (online softmax) + fused output projection. ----
    tQ = _pick_tile(L, q_tile)
    tK = _pick_tile(L, kv_tile)
    n_q, n_k = L // tQ, L // tK

    q_spec = pl.BlockSpec((1, head_num, tQ, hd), lambda b, qi, ki: (b, 0, qi, 0))
    kv_spec = pl.BlockSpec((1, head_num, tK, hd), lambda b, qi, ki: (b, 0, ki, 0))
    wo_spec = pl.BlockSpec((head_num, hd, H), lambda b, qi, ki: (0, 0, 0))
    bo_spec = pl.BlockSpec((1, H), lambda b, qi, ki: (0, 0))
    o_spec = pl.BlockSpec((1, tQ, H), lambda b, qi, ki: (b, qi, 0))

    return pl.pallas_call(
        _flash_attn_kernel,
        out_shape=jax.ShapeDtypeStruct((B, L, H), jnp.float32),
        grid_spec=pltpu.PrefetchScalarGridSpec(
            num_scalar_prefetch=0,
            grid=(B, n_q, n_k),
            in_specs=[q_spec, kv_spec, kv_spec, wo_spec, bo_spec],
            out_specs=o_spec,
            scratch_shapes=[
                pltpu.VMEM((head_num, tQ, 1), jnp.float32),   # running max
                pltpu.VMEM((head_num, tQ, 1), jnp.float32),   # running denom
                pltpu.VMEM((head_num, tQ, hd), jnp.float32),  # output accumulator
            ],
        ),
        compiler_params=pltpu.CompilerParams(
            dimension_semantics=("parallel", "parallel", "arbitrary"),
            vmem_limit_bytes=vmem_cap),
    )(qh, kh, vh, wo_b, bo2)


# ------------------------------- f32 reference -------------------------------

def _reference(Q, K, V, params, *, head_num):
    B, L, H = Q.shape
    hd = H // head_num
    wq, bq, wk, bk, wv, bv, wo, bo = params

    def split(x):
        return x.reshape(B, L, head_num, hd).transpose(0, 2, 1, 3)  # (B, nh, L, hd)

    Qp = split(Q @ wq + bq)
    Kp = split(K @ wk + bk)
    Vp = split(V @ wv + bv)
    s = jnp.einsum("bhqd,bhkd->bhqk", Qp, Kp) / math.sqrt(hd)
    w = jax.nn.softmax(s, axis=-1)
    o = jnp.einsum("bhqk,bhkd->bhqd", w, Vp)
    o = o.transpose(0, 2, 1, 3).reshape(B, L, H)
    return o @ wo + bo


if __name__ == "__main__":
    B, L, H, head_num = 2, 8, 32, 4

    key = jax.random.PRNGKey(0)
    keys = jax.random.split(key, 12)
    bound = 1.0 / math.sqrt(H)  # nn.Linear-like init scale
    wq = jax.random.uniform(keys[0], (H, H), jnp.float32, -bound, bound)
    bq = jax.random.uniform(keys[1], (H,), jnp.float32, -bound, bound)
    wk = jax.random.uniform(keys[2], (H, H), jnp.float32, -bound, bound)
    bk = jax.random.uniform(keys[3], (H,), jnp.float32, -bound, bound)
    wv = jax.random.uniform(keys[4], (H, H), jnp.float32, -bound, bound)
    bv = jax.random.uniform(keys[5], (H,), jnp.float32, -bound, bound)
    wo = jax.random.uniform(keys[6], (H, H), jnp.float32, -bound, bound)
    bo = jax.random.uniform(keys[7], (H,), jnp.float32, -bound, bound)
    params = (wq, bq, wk, bk, wv, bv, wo, bo)

    Q = jax.random.normal(keys[8], (B, L, H), jnp.float32)
    K = jax.random.normal(keys[9], (B, L, H), jnp.float32)
    V = jax.random.normal(keys[10], (B, L, H), jnp.float32)

    out = multi_head_attention(Q, K, V, params, head_num=head_num)
    out = jax.block_until_ready(out)

    ref = _reference(Q, K, V, params, head_num=head_num)
    assert out.shape == (B, L, H)
    # bf16 MXU operands (f32 accumulation) => looser tolerance than the f32 ref.
    assert jnp.allclose(out, ref, atol=5e-2, rtol=5e-2), (
        float(jnp.max(jnp.abs(out - ref))))

    print("KERNEL_OK")
</pallas_src>

<mosaic_0001>
module attributes {stable_mosaic.version = 11 : i64} {
  func.func @_qkv_proj_kernel(%arg0: i32, %arg1: i32, %arg2: memref<1x8x32xf32, #tpu.memory_space<vmem>>, %arg3: memref<1x8x32xf32, #tpu.memory_space<vmem>>, %arg4: memref<1x8x32xf32, #tpu.memory_space<vmem>>, %arg5: memref<32x32xbf16, #tpu.memory_space<vmem>>, %arg6: memref<1x32xf32, #tpu.memory_space<vmem>>, %arg7: memref<32x32xbf16, #tpu.memory_space<vmem>>, %arg8: memref<1x32xf32, #tpu.memory_space<vmem>>, %arg9: memref<32x32xbf16, #tpu.memory_space<vmem>>, %arg10: memref<1x32xf32, #tpu.memory_space<vmem>>, %arg11: memref<1x8x32xbf16, #tpu.memory_space<vmem>>, %arg12: memref<1x8x32xbf16, #tpu.memory_space<vmem>>, %arg13: memref<1x8x32xbf16, #tpu.memory_space<vmem>>) attributes {dimension_semantics = [#tpu.dimension_semantics<parallel>, #tpu.dimension_semantics<parallel>], iteration_bounds = array<i64: 2, 1>, scalar_prefetch = 0 : i64, scratch_operands = 0 : i64, tpu.core_type = #tpu.core_type<tc>, window_params = [{transform_indices = @transform_0, window_bounds = array<i64: 1, 8, 32>}, {transform_indices = @transform_1, window_bounds = array<i64: 1, 8, 32>}, {transform_indices = @transform_2, window_bounds = array<i64: 1, 8, 32>}, {pipeline_mode = #tpu.pipeline_mode<synchronous>, transform_indices = @transform_3, window_bounds = array<i64: 32, 32>}, {pipeline_mode = #tpu.pipeline_mode<synchronous>, transform_indices = @transform_4, window_bounds = array<i64: 1, 32>}, {pipeline_mode = #tpu.pipeline_mode<synchronous>, transform_indices = @transform_5, window_bounds = array<i64: 32, 32>}, {pipeline_mode = #tpu.pipeline_mode<synchronous>, transform_indices = @transform_6, window_bounds = array<i64: 1, 32>}, {pipeline_mode = #tpu.pipeline_mode<synchronous>, transform_indices = @transform_7, window_bounds = array<i64: 32, 32>}, {pipeline_mode = #tpu.pipeline_mode<synchronous>, transform_indices = @transform_8, window_bounds = array<i64: 1, 32>}, {transform_indices = @transform_9, window_bounds = array<i64: 1, 8, 32>}, {transform_indices = @transform_10, window_bounds = array<i64: 1, 8, 32>}, {transform_indices = @transform_11, window_bounds = array<i64: 1, 8, 32>}]} {
    %c0 = arith.constant 0 : index
    %c0_0 = arith.constant 0 : index
    %c0_1 = arith.constant 0 : index
    %0 = vector.load %arg2[%c0, %c0_0, %c0_1] : memref<1x8x32xf32, #tpu.memory_space<vmem>>, vector<1x8x32xf32>
    %1 = vector.shape_cast %0 : vector<1x8x32xf32> to vector<8x32xf32>
    %2 = arith.truncf %1 : vector<8x32xf32> to vector<8x32xbf16>
    %c0_2 = arith.constant 0 : index
    %c0_3 = arith.constant 0 : index
    %c0_4 = arith.constant 0 : index
    %3 = vector.load %arg3[%c0_2, %c0_3, %c0_4] : memref<1x8x32xf32, #tpu.memory_space<vmem>>, vector<1x8x32xf32>
    %4 = vector.shape_cast %3 : vector<1x8x32xf32> to vector<8x32xf32>
    %5 = arith.truncf %4 : vector<8x32xf32> to vector<8x32xbf16>
    %c0_5 = arith.constant 0 : index
    %c0_6 = arith.constant 0 : index
    %c0_7 = arith.constant 0 : index
    %6 = vector.load %arg4[%c0_5, %c0_6, %c0_7] : memref<1x8x32xf32, #tpu.memory_space<vmem>>, vector<1x8x32xf32>
    %7 = vector.shape_cast %6 : vector<1x8x32xf32> to vector<8x32xf32>
    %8 = arith.truncf %7 : vector<8x32xf32> to vector<8x32xbf16>
    %c0_8 = arith.constant 0 : index
    %c0_9 = arith.constant 0 : index
    %9 = vector.load %arg5[%c0_8, %c0_9] : memref<32x32xbf16, #tpu.memory_space<vmem>>, vector<32x32xbf16>
    %cst = arith.constant dense<0.000000e+00> : vector<8x32xf32>
    %10 = tpu.matmul %2, %9, %cst {dimension_numbers = #tpu.dot_dimension_numbers<[1], [0], [0], [1], [0, 0, 1, 1], [], []>} : vector<8x32xbf16>, vector<32x32xbf16>, vector<8x32xf32> -> vector<8x32xf32>
    %c0_10 = arith.constant 0 : index
    %c0_11 = arith.constant 0 : index
    %11 = vector.load %arg6[%c0_10, %c0_11] : memref<1x32xf32, #tpu.memory_space<vmem>>, vector<1x32xf32>
    %12 = vector.broadcast %11 : vector<1x32xf32> to vector<8x32xf32>
    %13 = arith.addf %10, %12 : vector<8x32xf32>
    %c0_12 = arith.constant 0 : index
    %c0_13 = arith.constant 0 : index
    %14 = vector.load %arg7[%c0_12, %c0_13] : memref<32x32xbf16, #tpu.memory_space<vmem>>, vector<32x32xbf16>
    %cst_14 = arith.constant dense<0.000000e+00> : vector<8x32xf32>
    %15 = tpu.matmul %5, %14, %cst_14 {dimension_numbers = #tpu.dot_dimension_numbers<[1], [0], [0], [1], [0, 0, 1, 1], [], []>} : vector<8x32xbf16>, vector<32x32xbf16>, vector<8x32xf32> -> vector<8x32xf32>
    %c0_15 = arith.constant 0 : index
    %c0_16 = arith.constant 0 : index
    %16 = vector.load %arg8[%c0_15, %c0_16] : memref<1x32xf32, #tpu.memory_space<vmem>>, vector<1x32xf32>
    %17 = vector.broadcast %16 : vector<1x32xf32> to vector<8x32xf32>
    %18 = arith.addf %15, %17 : vector<8x32xf32>
    %c0_17 = arith.constant 0 : index
    %c0_18 = arith.constant 0 : index
    %19 = vector.load %arg9[%c0_17, %c0_18] : memref<32x32xbf16, #tpu.memory_space<vmem>>, vector<32x32xbf16>
    %cst_19 = arith.constant dense<0.000000e+00> : vector<8x32xf32>
    %20 = tpu.matmul %8, %19, %cst_19 {dimension_numbers = #tpu.dot_dimension_numbers<[1], [0], [0], [1], [0, 0, 1, 1], [], []>} : vector<8x32xbf16>, vector<32x32xbf16>, vector<8x32xf32> -> vector<8x32xf32>
    %c0_20 = arith.constant 0 : index
    %c0_21 = arith.constant 0 : index
    %21 = vector.load %arg10[%c0_20, %c0_21] : memref<1x32xf32, #tpu.memory_space<vmem>>, vector<1x32xf32>
    %22 = vector.broadcast %21 : vector<1x32xf32> to vector<8x32xf32>
    %23 = arith.addf %20, %22 : vector<8x32xf32>
    %cst_22 = arith.constant 0.353553385 : f32
    %24 = vector.broadcast %cst_22 : f32 to vector<8x32xf32>
    %25 = arith.mulf %13, %24 : vector<8x32xf32>
    %26 = arith.truncf %25 : vector<8x32xf32> to vector<8x32xbf16>
    %c0_23 = arith.constant 0 : index
    %c0_24 = arith.constant 0 : index
    %c0_25 = arith.constant 0 : index
    %27 = vector.load %arg11[%c0_23, %c0_24, %c0_25] : memref<1x8x32xbf16, #tpu.memory_space<vmem>>, vector<1x8x32xbf16>
    %28 = vector.shape_cast %27 : vector<1x8x32xbf16> to vector<8x32xbf16>
    %29 = vector.shape_cast %26 : vector<8x32xbf16> to vector<1x8x32xbf16>
    tpu.vector_store %arg11[%c0_23, %c0_24, %c0_25], %29 {strides = array<i32>} : memref<1x8x32xbf16, #tpu.memory_space<vmem>>, vector<1x8x32xbf16>,
    %30 = arith.truncf %18 : vector<8x32xf32> to vector<8x32xbf16>
    %c0_26 = arith.constant 0 : index
    %c0_27 = arith.constant 0 : index
    %c0_28 = arith.constant 0 : index
    %31 = vector.load %arg12[%c0_26, %c0_27, %c0_28] : memref<1x8x32xbf16, #tpu.memory_space<vmem>>, vector<1x8x32xbf16>
    %32 = vector.shape_cast %31 : vector<1x8x32xbf16> to vector<8x32xbf16>
    %33 = vector.shape_cast %30 : vector<8x32xbf16> to vector<1x8x32xbf16>
    tpu.vector_store %arg12[%c0_26, %c0_27, %c0_28], %33 {strides = array<i32>} : memref<1x8x32xbf16, #tpu.memory_space<vmem>>, vector<1x8x32xbf16>,
    %34 = arith.truncf %23 : vector<8x32xf32> to vector<8x32xbf16>
    %c0_29 = arith.constant 0 : index
    %c0_30 = arith.constant 0 : index
    %c0_31 = arith.constant 0 : index
    %35 = vector.load %arg13[%c0_29, %c0_30, %c0_31] : memref<1x8x32xbf16, #tpu.memory_space<vmem>>, vector<1x8x32xbf16>
    %36 = vector.shape_cast %35 : vector<1x8x32xbf16> to vector<8x32xbf16>
    %37 = vector.shape_cast %34 : vector<8x32xbf16> to vector<1x8x32xbf16>
    tpu.vector_store %arg13[%c0_29, %c0_30, %c0_31], %37 {strides = array<i32>} : memref<1x8x32xbf16, #tpu.memory_space<vmem>>, vector<1x8x32xbf16>,
    return
  }
  func.func @transform_0(%arg0: i32, %arg1: i32) -> (i32, i32, i32) {
    %c0_i32 = arith.constant 0 : i32
    %c0_i32_0 = arith.constant 0 : i32
    return %arg0, %arg1, %c0_i32 : i32, i32, i32
  }
  func.func @transform_1(%arg0: i32, %arg1: i32) -> (i32, i32, i32) {
    %c0_i32 = arith.constant 0 : i32
    %c0_i32_0 = arith.constant 0 : i32
    return %arg0, %arg1, %c0_i32 : i32, i32, i32
  }
  func.func @transform_2(%arg0: i32, %arg1: i32) -> (i32, i32, i32) {
    %c0_i32 = arith.constant 0 : i32
    %c0_i32_0 = arith.constant 0 : i32
    return %arg0, %arg1, %c0_i32 : i32, i32, i32
  }
  func.func @transform_3(%arg0: i32, %arg1: i32) -> (i32, i32) {
    %c0_i32 = arith.constant 0 : i32
    %c0_i32_0 = arith.constant 0 : i32
    %c0_i32_1 = arith.constant 0 : i32
    return %c0_i32, %c0_i32_0 : i32, i32
  }
  func.func @transform_4(%arg0: i32, %arg1: i32) -> (i32, i32) {
    %c0_i32 = arith.constant 0 : i32
    %c0_i32_0 = arith.constant 0 : i32
    %c0_i32_1 = arith.constant 0 : i32
    return %c0_i32, %c0_i32_0 : i32, i32
  }
  func.func @transform_5(%arg0: i32, %arg1: i32) -> (i32, i32) {
    %c0_i32 = arith.constant 0 : i32
    %c0_i32_0 = arith.constant 0 : i32
    %c0_i32_1 = arith.constant 0 : i32
    return %c0_i32, %c0_i32_0 : i32, i32
  }
  func.func @transform_6(%arg0: i32, %arg1: i32) -> (i32, i32) {
    %c0_i32 = arith.constant 0 : i32
    %c0_i32_0 = arith.constant 0 : i32
    %c0_i32_1 = arith.constant 0 : i32
    return %c0_i32, %c0_i32_0 : i32, i32
  }
  func.func @transform_7(%arg0: i32, %arg1: i32) -> (i32, i32) {
    %c0_i32 = arith.constant 0 : i32
    %c0_i32_0 = arith.constant 0 : i32
    %c0_i32_1 = arith.constant 0 : i32
    return %c0_i32, %c0_i32_0 : i32, i32
  }
  func.func @transform_8(%arg0: i32, %arg1: i32) -> (i32, i32) {
    %c0_i32 = arith.constant 0 : i32
    %c0_i32_0 = arith.constant 0 : i32
    %c0_i32_1 = arith.constant 0 : i32
    return %c0_i32, %c0_i32_0 : i32, i32
  }
  func.func @transform_9(%arg0: i32, %arg1: i32) -> (i32, i32, i32) {
    %c0_i32 = arith.constant 0 : i32
    %c0_i32_0 = arith.constant 0 : i32
    return %arg0, %arg1, %c0_i32 : i32, i32, i32
  }
  func.func @transform_10(%arg0: i32, %arg1: i32) -> (i32, i32, i32) {
    %c0_i32 = arith.constant 0 : i32
    %c0_i32_0 = arith.constant 0 : i32
    return %arg0, %arg1, %c0_i32 : i32, i32, i32
  }
  func.func @transform_11(%arg0: i32, %arg1: i32) -> (i32, i32, i32) {
    %c0_i32 = arith.constant 0 : i32
    %c0_i32_0 = arith.constant 0 : i32
    return %arg0, %arg1, %c0_i32 : i32, i32, i32
  }
}

</mosaic_0001>

<llo_original>
// kernel: tpu_custom_call.1
$region0: #{tpu_custom_call.1}
  #allocation0 [shape = 'u32[]', space=smem, size = 0x4, offset = 0x4, fixed_abs, tag = 'smem constant byte address 0x4 - core index']
  #allocation1 [shape = 'u32[144,128]{1,0:T(1,128)}', space=vmem, size = 0x12000, scoped, tag = 'internal scratch']
  %s0 = inlined_call_operand.hbm [shape: f32[2,8,32], index: 0, kind: input, shape index: {}]
  %s1 = inlined_call_operand.hbm [shape: f32[2,8,32], index: 1, kind: input, shape index: {}]
  %s2 = inlined_call_operand.hbm [shape: f32[2,8,32], index: 2, kind: input, shape index: {}]
  %s3 = inlined_call_operand.hbm [shape: bf16[32,32], index: 3, kind: input, shape index: {}]
  %s4 = inlined_call_operand.hbm [shape: f32[1,32], index: 4, kind: input, shape index: {}]
  %s5 = inlined_call_operand.hbm [shape: bf16[32,32], index: 5, kind: input, shape index: {}]
  %s6 = inlined_call_operand.hbm [shape: f32[1,32], index: 6, kind: input, shape index: {}]
  %s7 = inlined_call_operand.hbm [shape: bf16[32,32], index: 7, kind: input, shape index: {}]
  %s8 = inlined_call_operand.hbm [shape: f32[1,32], index: 8, kind: input, shape index: {}]
  %s9 = inlined_call_operand.hbm [shape: bf16[2,8,32], index: 9, kind: output, shape index: {0}]
  %s10 = inlined_call_operand.hbm [shape: bf16[2,8,32], index: 10, kind: output, shape index: {1}]
  %s11 = inlined_call_operand.hbm [shape: bf16[2,8,32], index: 11, kind: output, shape index: {2}]
  %12 = xla_tuple %s9, %s10, %s11
  %s13 = sld [smem:[#allocation0]]
  $region121: #{tpu_custom_call.1} parent=0
    _
  %s15 = ssub.s32 1, %s13
  %s16 = scalar_select 0, %s15, %s13
  $region1: #{tpu_custom_call.1} parent=0
    #allocation2 [shape = 'u8[8192]{0}', space=vmem, size = 0x2000, scoped, tag = 'input window, operand 0']
    #allocation3 [shape = 's32[2]{0}', space=sflag, size = 0x8, scoped, tag = 'scoped memory for tpu_custom_call.1']
    #allocation4 [shape = 's32[2]{0}', space=sflag, size = 0x8, scoped, tag = 'scoped memory for tpu_custom_call.1']
    #allocation5 [shape = 'u8[8192]{0}', space=vmem, size = 0x2000, scoped, tag = 'input window, operand 1']
    #allocation6 [shape = 's32[2]{0}', space=sflag, size = 0x8, scoped, tag = 'scoped memory for tpu_custom_call.1']
    #allocation7 [shape = 'u8[8192]{0}', space=vmem, size = 0x2000, scoped, tag = 'input window, operand 2']
    #allocation8 [shape = 'u8[8192]{0}', space=vmem, size = 0x2000, scoped, tag = 'input window, operand 3, single buffered']
    #allocation9 [shape = 's32[1]{0}', space=sflag, size = 0x4, scoped, tag = 'scoped memory for tpu_custom_call.1']
    #allocation10 [shape = 'u8[512]{0}', space=vmem, size = 0x400, scoped, tag = 'input window, operand 4, single buffered']
    #allocation11 [shape = 'u8[8192]{0}', space=vmem, size = 0x2000, scoped, tag = 'input window, operand 5, single buffered']
    #allocation12 [shape = 's32[1]{0}', space=sflag, size = 0x4, scoped, tag = 'scoped memory for tpu_custom_call.1']
    #allocation13 [shape = 'u8[512]{0}', space=vmem, size = 0x400, scoped, tag = 'input window, operand 6, single buffered']
    #allocation14 [shape = 'u8[8192]{0}', space=vmem, size = 0x2000, scoped, tag = 'input window, operand 7, single buffered']
    #allocation15 [shape = 's32[1]{0}', space=sflag, size = 0x4, scoped, tag = 'scoped memory for tpu_custom_call.1']
    #allocation16 [shape = 'u8[512]{0}', space=vmem, size = 0x400, scoped, tag = 'input window, operand 8, single buffered']
    #allocation17 [shape = 'u8[4096]{0}', space=vmem, size = 0x1000, scoped, tag = 'output window, operand 0']
    #allocation18 [shape = 'u8[4096]{0}', space=vmem, size = 0x1000, scoped, tag = 'output window, operand 1']
    #allocation19 [shape = 's32[2]{0}', space=sflag, size = 0x8, scoped, tag = 'scoped memory for tpu_custom_call.1']
    #allocation20 [shape = 'u8[4096]{0}', space=vmem, size = 0x1000, scoped, tag = 'output window, operand 2']
    %17 = vsyncpa [#allocation3], 0
    %s18 = scalar_lea.sflag [#allocation3], 1
    %19 = vsyncpa %s18, 0
    %20 = vsyncpa [#allocation6], 0
    %s21 = scalar_lea.sflag [#allocation6], 1
    %22 = vsyncpa %s21, 0
    %23 = vsyncpa [#allocation9], 0
    %24 = vsyncpa [#allocation12], 0
    %25 = vsyncpa [#allocation15], 0
    %26 = vsyncpa [#allocation4], 0
    %s27 = scalar_lea.sflag [#allocation4], 1
    %28 = vsyncpa %s27, 0
    %29 = vsyncpa [#allocation19], 0
    %s30 = scalar_lea.sflag [#allocation19], 1
    %31 = vsyncpa %s30, 0
    loop: start=0, step=1, limit=4
    $region2: #{tpu_custom_call.1} parent=1 // loop_pre_header
      _
    $region3: #{tpu_custom_call.1} parent=1 // loop_header
      %s33 = sphi 0, %s37
      %p34 = scmp.ge.s32.totalorder %s33, 4
      %s40 = sphi 0, %s52
      %s41 = sphi 0, %s48
      %s42 = sphi 0, %s40
      %s43 = sphi 0, %s41
      %s44 = sphi 0, %s42
      %s45 = sphi 0, %s43
      %s57 = sphi 0, %s59
      %s60 = sphi 0, %s57
      %s61 = sphi 0, %s60
      %s77 = sphi 0, %s61
      %s85 = sphi 0, %s87
      %s88 = sphi 0, %s85
      %s89 = sphi 0, %s88
      %s105 = sphi 0, %s89
      %s113 = sphi 0, %s115
      %s116 = sphi 0, %s113
      %s117 = sphi 0, %s116
      %s133 = sphi 0, %s117
      %s137 = sphi 0, %s137
      %s139 = sphi 0, %s137
      %s140 = sphi 0, %s139
      %s154 = sphi 0, %s140
      %s158 = sphi 0, %s158
      %s160 = sphi 0, %s158
      %s161 = sphi 0, %s160
      %s175 = sphi 0, %s161
      %s179 = sphi 0, %s179
      %s181 = sphi 0, %s179
      %s182 = sphi 0, %s181
      %s196 = sphi 0, %s182
      %s200 = sphi 0, %s200
      %s202 = sphi 0, %s200
      %s203 = sphi 0, %s202
      %s217 = sphi 0, %s203
      %s221 = sphi 0, %s221
      %s223 = sphi 0, %s221
      %s224 = sphi 0, %s223
      %s238 = sphi 0, %s224
      %s242 = sphi 0, %s242
      %s244 = sphi 0, %s242
      %s245 = sphi 0, %s244
      %s259 = sphi 0, %s245
      %s267 = sphi 0, %s269
      %s270 = sphi 0, %s267
      %s271 = sphi 0, %s270
      %s287 = sphi 0, %s271
      %s295 = sphi 0, %s297
      %s298 = sphi 0, %s295
      %s299 = sphi 0, %s298
      %s315 = sphi 0, %s299
      %s323 = sphi 0, %s325
      %s326 = sphi 0, %s323
      %s327 = sphi 0, %s326
      %s343 = sphi 0, %s327
    $region4: #{tpu_custom_call.1} parent=1 // loop_header_branch
      %36 = sbr.rel (%p34) target = $region8
    $region5: #{tpu_custom_call.1} parent=1 // loop_body
      %s38 = ssub.s32 %s33, 1
      %s39 = ssub.s32 %s33, 2
      %s46 = sadd.s32 1, %s41
      %p47 = scmp.ge.s32.totalorder %s46, 1
      %s48 = scalar_select %p47, 0, %s46
      %s49 = sadd.s32 1, %s40
      %s50 = scalar_select %p47, %s49, %s40
      %p51 = scmp.ge.s32.totalorder %s50, 2
      %s52 = scalar_select %p51, 0, %s50
      %s53 = ssub.s32 %s40, %s52
      %s54 = ssub.s32 %s41, %s48
      %s55 = sor.u32 %s53, %s54
      %p56 = scmp.eq.s32.totalorder %s55, 0
      %s58 = sadd.s32 %s57, 1
      %s59 = scalar_select %p56, %s57, %s58
      %p62 = pneg %p56
      %p63 = scmp.eq.s32.totalorder %s33, 1
      %p64 = por %p62, %p63
      %p65 = scmp.ne.s32.totalorder %s57, %s60
      %p66 = scmp.eq.s32.totalorder %s33, 0
      %p67 = por %p65, %p66
      %p68 = scmp.ne.s32.totalorder %s57, %s60
      %p69 = scmp.eq.s32.totalorder %s38, 1
      %p70 = por %p68, %p69
      %p71 = scmp.ne.s32.totalorder %s60, %s61
      %p72 = scmp.eq.s32.totalorder %s38, 0
      %p73 = por %p71, %p72
      %p74 = scmp.ne.s32.totalorder %s60, %s61
      %p75 = scmp.eq.s32.totalorder %s39, 1
      %p76 = por %p74, %p75
      %p78 = scmp.ne.s32.totalorder %s61, %s77
      %p79 = scmp.eq.s32.totalorder %s39, 0
      %p80 = por %p78, %p79
      %s81 = ssub.s32 %s40, %s52
      %s82 = ssub.s32 %s41, %s48
      %s83 = sor.u32 %s81, %s82
      %p84 = scmp.eq.s32.totalorder %s83, 0
      %s86 = sadd.s32 %s85, 1
      %s87 = scalar_select %p84, %s85, %s86
      %p90 = pneg %p84
      %p91 = scmp.eq.s32.totalorder %s33, 1
      %p92 = por %p90, %p91
      %p93 = scmp.ne.s32.totalorder %s85, %s88
      %p94 = scmp.eq.s32.totalorder %s33, 0
      %p95 = por %p93, %p94
      %p96 = scmp.ne.s32.totalorder %s85, %s88
      %p97 = scmp.eq.s32.totalorder %s38, 1
      %p98 = por %p96, %p97
      %p99 = scmp.ne.s32.totalorder %s88, %s89
      %p100 = scmp.eq.s32.totalorder %s38, 0
      %p101 = por %p99, %p100
      %p102 = scmp.ne.s32.totalorder %s88, %s89
      %p103 = scmp.eq.s32.totalorder %s39, 1
      %p104 = por %p102, %p103
      %p106 = scmp.ne.s32.totalorder %s89, %s105
      %p107 = scmp.eq.s32.totalorder %s39, 0
      %p108 = por %p106, %p107
      %s109 = ssub.s32 %s40, %s52
      %s110 = ssub.s32 %s41, %s48
      %s111 = sor.u32 %s109, %s110
      %p112 = scmp.eq.s32.totalorder %s111, 0
      %s114 = sadd.s32 %s113, 1
      %s115 = scalar_select %p112, %s113, %s114
      %p118 = pneg %p112
      %p119 = scmp.eq.s32.totalorder %s33, 1
      %p120 = por %p118, %p119
      %p121 = scmp.ne.s32.totalorder %s113, %s116
      %p122 = scmp.eq.s32.totalorder %s33, 0
      %p123 = por %p121, %p122
      %p124 = scmp.ne.s32.totalorder %s113, %s116
      %p125 = scmp.eq.s32.totalorder %s38, 1
      %p126 = por %p124, %p125
      %p127 = scmp.ne.s32.totalorder %s116, %s117
      %p128 = scmp.eq.s32.totalorder %s38, 0
      %p129 = por %p127, %p128
      %p130 = scmp.ne.s32.totalorder %s116, %s117
      %p131 = scmp.eq.s32.totalorder %s39, 1
      %p132 = por %p130, %p131
      %p134 = scmp.ne.s32.totalorder %s117, %s133
      %p135 = scmp.eq.s32.totalorder %s39, 0
      %p136 = por %p134, %p135
      %s138 = sadd.s32 %s137, 1
      %p141 = scmp.eq.s32.totalorder %s33, 1
      %p142 = scmp.ne.s32.totalorder %s137, %s139
      %p143 = scmp.eq.s32.totalorder %s33, 0
      %p144 = por %p142, %p143
      %p145 = scmp.ne.s32.totalorder %s137, %s139
      %p146 = scmp.eq.s32.totalorder %s38, 1
      %p147 = por %p145, %p146
      %p148 = scmp.ne.s32.totalorder %s139, %s140
      %p149 = scmp.eq.s32.totalorder %s38, 0
      %p150 = por %p148, %p149
      %p151 = scmp.ne.s32.totalorder %s139, %s140
      %p152 = scmp.eq.s32.totalorder %s39, 1
      %p153 = por %p151, %p152
      %p155 = scmp.ne.s32.totalorder %s140, %s154
      %p156 = scmp.eq.s32.totalorder %s39, 0
      %p157 = por %p155, %p156
      %s159 = sadd.s32 %s158, 1
      %p162 = scmp.eq.s32.totalorder %s33, 1
      %p163 = scmp.ne.s32.totalorder %s158, %s160
      %p164 = scmp.eq.s32.totalorder %s33, 0
      %p165 = por %p163, %p164
      %p166 = scmp.ne.s32.totalorder %s158, %s160
      %p167 = scmp.eq.s32.totalorder %s38, 1
      %p168 = por %p166, %p167
      %p169 = scmp.ne.s32.totalorder %s160, %s161
      %p170 = scmp.eq.s32.totalorder %s38, 0
      %p171 = por %p169, %p170
      %p172 = scmp.ne.s32.totalorder %s160, %s161
      %p173 = scmp.eq.s32.totalorder %s39, 1
      %p174 = por %p172, %p173
      %p176 = scmp.ne.s32.totalorder %s161, %s175
      %p177 = scmp.eq.s32.totalorder %s39, 0
      %p178 = por %p176, %p177
      %s180 = sadd.s32 %s179, 1
      %p183 = scmp.eq.s32.totalorder %s33, 1
      %p184 = scmp.ne.s32.totalorder %s179, %s181
      %p185 = scmp.eq.s32.totalorder %s33, 0
      %p186 = por %p184, %p185
      %p187 = scmp.ne.s32.totalorder %s179, %s181
      %p188 = scmp.eq.s32.totalorder %s38, 1
      %p189 = por %p187, %p188
      %p190 = scmp.ne.s32.totalorder %s181, %s182
      %p191 = scmp.eq.s32.totalorder %s38, 0
      %p192 = por %p190, %p191
      %p193 = scmp.ne.s32.totalorder %s181, %s182
      %p194 = scmp.eq.s32.totalorder %s39, 1
      %p195 = por %p193, %p194
      %p197 = scmp.ne.s32.totalorder %s182, %s196
      %p198 = scmp.eq.s32.totalorder %s39, 0
      %p199 = por %p197, %p198
      %s201 = sadd.s32 %s200, 1
      %p204 = scmp.eq.s32.totalorder %s33, 1
      %p205 = scmp.ne.s32.totalorder %s200, %s202
      %p206 = scmp.eq.s32.totalorder %s33, 0
      %p207 = por %p205, %p206
      %p208 = scmp.ne.s32.totalorder %s200, %s202
      %p209 = scmp.eq.s32.totalorder %s38, 1
      %p210 = por %p208, %p209
      %p211 = scmp.ne.s32.totalorder %s202, %s203
      %p212 = scmp.eq.s32.totalorder %s38, 0
      %p213 = por %p211, %p212
      %p214 = scmp.ne.s32.totalorder %s202, %s203
      %p215 = scmp.eq.s32.totalorder %s39, 1
      %p216 = por %p214, %p215
      %p218 = scmp.ne.s32.totalorder %s203, %s217
      %p219 = scmp.eq.s32.totalorder %s39, 0
      %p220 = por %p218, %p219
      %s222 = sadd.s32 %s221, 1
      %p225 = scmp.eq.s32.totalorder %s33, 1
      %p226 = scmp.ne.s32.totalorder %s221, %s223
      %p227 = scmp.eq.s32.totalorder %s33, 0
      %p228 = por %p226, %p227
      %p229 = scmp.ne.s32.totalorder %s221, %s223
      %p230 = scmp.eq.s32.totalorder %s38, 1
      %p231 = por %p229, %p230
      %p232 = scmp.ne.s32.totalorder %s223, %s224
      %p233 = scmp.eq.s32.totalorder %s38, 0
      %p234 = por %p232, %p233
      %p235 = scmp.ne.s32.totalorder %s223, %s224
      %p236 = scmp.eq.s32.totalorder %s39, 1
      %p237 = por %p235, %p236
      %p239 = scmp.ne.s32.totalorder %s224, %s238
      %p240 = scmp.eq.s32.totalorder %s39, 0
      %p241 = por %p239, %p240
      %s243 = sadd.s32 %s242, 1
      %p246 = scmp.eq.s32.totalorder %s33, 1
      %p247 = scmp.ne.s32.totalorder %s242, %s244
      %p248 = scmp.eq.s32.totalorder %s33, 0
      %p249 = por %p247, %p248
      %p250 = scmp.ne.s32.totalorder %s242, %s244
      %p251 = scmp.eq.s32.totalorder %s38, 1
      %p252 = por %p250, %p251
      %p253 = scmp.ne.s32.totalorder %s244, %s245
      %p254 = scmp.eq.s32.totalorder %s38, 0
      %p255 = por %p253, %p254
      %p256 = scmp.ne.s32.totalorder %s244, %s245
      %p257 = scmp.eq.s32.totalorder %s39, 1
      %p258 = por %p256, %p257
      %p260 = scmp.ne.s32.totalorder %s245, %s259
      %p261 = scmp.eq.s32.totalorder %s39, 0
      %p262 = por %p260, %p261
      %s263 = ssub.s32 %s40, %s52
      %s264 = ssub.s32 %s41, %s48
      %s265 = sor.u32 %s263, %s264
      %p266 = scmp.eq.s32.totalorder %s265, 0
      %s268 = sadd.s32 %s267, 1
      %s269 = scalar_select %p266, %s267, %s268
      %p272 = pneg %p266
      %p273 = scmp.eq.s32.totalorder %s33, 1
      %p274 = por %p272, %p273
      %p275 = scmp.ne.s32.totalorder %s267, %s270
      %p276 = scmp.eq.s32.totalorder %s33, 0
      %p277 = por %p275, %p276
      %p278 = scmp.ne.s32.totalorder %s267, %s270
      %p279 = scmp.eq.s32.totalorder %s38, 1
      %p280 = por %p278, %p279
      %p281 = scmp.ne.s32.totalorder %s270, %s271
      %p282 = scmp.eq.s32.totalorder %s38, 0
      %p283 = por %p281, %p282
      %p284 = scmp.ne.s32.totalorder %s270, %s271
      %p285 = scmp.eq.s32.totalorder %s39, 1
      %p286 = por %p284, %p285
      %p288 = scmp.ne.s32.totalorder %s271, %s287
      %p289 = scmp.eq.s32.totalorder %s39, 0
      %p290 = por %p288, %p289
      %s291 = ssub.s32 %s40, %s52
      %s292 = ssub.s32 %s41, %s48
      %s293 = sor.u32 %s291, %s292
      %p294 = scmp.eq.s32.totalorder %s293, 0
      %s296 = sadd.s32 %s295, 1
      %s297 = scalar_select %p294, %s295, %s296
      %p300 = pneg %p294
      %p301 = scmp.eq.s32.totalorder %s33, 1
      %p302 = por %p300, %p301
      %p303 = scmp.ne.s32.totalorder %s295, %s298
      %p304 = scmp.eq.s32.totalorder %s33, 0
      %p305 = por %p303, %p304
      %p306 = scmp.ne.s32.totalorder %s295, %s298
      %p307 = scmp.eq.s32.totalorder %s38, 1
      %p308 = por %p306, %p307
      %p309 = scmp.ne.s32.totalorder %s298, %s299
      %p310 = scmp.eq.s32.totalorder %s38, 0
      %p311 = por %p309, %p310
      %p312 = scmp.ne.s32.totalorder %s298, %s299
      %p313 = scmp.eq.s32.totalorder %s39, 1
      %p314 = por %p312, %p313
      %p316 = scmp.ne.s32.totalorder %s299, %s315
      %p317 = scmp.eq.s32.totalorder %s39, 0
      %p318 = por %p316, %p317
      %s319 = ssub.s32 %s40, %s52
      %s320 = ssub.s32 %s41, %s48
      %s321 = sor.u32 %s319, %s320
      %p322 = scmp.eq.s32.totalorder %s321, 0
      %s324 = sadd.s32 %s323, 1
      %s325 = scalar_select %p322, %s323, %s324
      %p328 = pneg %p322
      %p329 = scmp.eq.s32.totalorder %s33, 1
      %p330 = por %p328, %p329
      %p331 = scmp.ne.s32.totalorder %s323, %s326
      %p332 = scmp.eq.s32.totalorder %s33, 0
      %p333 = por %p331, %p332
      %p334 = scmp.ne.s32.totalorder %s323, %s326
      %p335 = scmp.eq.s32.totalorder %s38, 1
      %p336 = por %p334, %p335
      %p337 = scmp.ne.s32.totalorder %s326, %s327
      %p338 = scmp.eq.s32.totalorder %s38, 0
      %p339 = por %p337, %p338
      %p340 = scmp.ne.s32.totalorder %s326, %s327
      %p341 = scmp.eq.s32.totalorder %s39, 1
      %p342 = por %p340, %p341
      %p344 = scmp.ne.s32.totalorder %s327, %s343
      %p345 = scmp.eq.s32.totalorder %s39, 0
      %p346 = por %p344, %p345
      %p347 = scmp.le.s32.totalorder 1, %s33
      %p348 = scmp.lt.s32.totalorder %s33, 3
      %p349 = pnand %p347, %p348
      %p350 = pneg %p349
      // Predicated region
      $region9: #{tpu_custom_call.1} parent=5 // pred_check
        _
      $region10: #{tpu_custom_call.1} parent=5 // pred_check_branch
        %352 = sbr.rel (%p349) target = $region12
      $region11: #{tpu_custom_call.1} parent=5 // pred_region
        %s353 = ssub.s32 %s33, 1
        // Predicated region
        $region13: #{tpu_custom_call.1} parent=11 // pred_check
          %p354 = pneg %p150
        $region14: #{tpu_custom_call.1} parent=11 // pred_check_branch
          %356 = sbr.rel (%p354) target = $region16
        $region15: #{tpu_custom_call.1} parent=11 // pred_region
          %s358 = ssub.s32 256, 256
          %359 = vsyncadd [#allocation9], %s358
          %s360 = sshll.u32 [#allocation8], 4
          %s361 = int_to_ptr.vmem [resolvable:$true] %s360
          %366 = dma.hbm_to_vmem [thread:$0]  %s3, 256, %s361, [#allocation9], 64, 64, 4
        $region16: #{tpu_custom_call.1} parent=11 // pred_fallthru
          _
        // Predicated region
        $region17: #{tpu_custom_call.1} parent=11 // pred_check
          %p367 = pneg %p171
        $region18: #{tpu_custom_call.1} parent=11 // pred_check_branch
          %369 = sbr.rel (%p367) target = $region20
        $region19: #{tpu_custom_call.1} parent=11 // pred_region
          %s371 = ssub.s32 16, 16
          %372 = vsyncadd [#allocation9], %s371
          %s374 = sshll.u32 [#allocation10], 4
          %s375 = int_to_ptr.vmem [resolvable:$true] %s374
          %377 = dma.hbm_to_vmem [thread:$0]  %s4, 16, %s375, [#allocation9]
        $region20: #{tpu_custom_call.1} parent=11 // pred_fallthru
          _
        // Predicated region
        $region21: #{tpu_custom_call.1} parent=11 // pred_check
          %p378 = pneg %p192
        $region22: #{tpu_custom_call.1} parent=11 // pred_check_branch
          %380 = sbr.rel (%p378) target = $region24
        $region23: #{tpu_custom_call.1} parent=11 // pred_region
          %s382 = ssub.s32 256, 256
          %383 = vsyncadd [#allocation12], %s382
          %s384 = sshll.u32 [#allocation11], 4
          %s385 = int_to_ptr.vmem [resolvable:$true] %s384
          %390 = dma.hbm_to_vmem [thread:$0]  %s5, 256, %s385, [#allocation12], 64, 64, 4
        $region24: #{tpu_custom_call.1} parent=11 // pred_fallthru
          _
        // Predicated region
        $region25: #{tpu_custom_call.1} parent=11 // pred_check
          %p391 = pneg %p213
        $region26: #{tpu_custom_call.1} parent=11 // pred_check_branch
          %393 = sbr.rel (%p391) target = $region28
        $region27: #{tpu_custom_call.1} parent=11 // pred_region
          %s395 = ssub.s32 16, 16
          %396 = vsyncadd [#allocation12], %s395
          %s398 = sshll.u32 [#allocation13], 4
          %s399 = int_to_ptr.vmem [resolvable:$true] %s398
          %401 = dma.hbm_to_vmem [thread:$0]  %s6, 16, %s399, [#allocation12]
        $region28: #{tpu_custom_call.1} parent=11 // pred_fallthru
          _
        // Predicated region
        $region29: #{tpu_custom_call.1} parent=11 // pred_check
          %p402 = pneg %p234
        $region30: #{tpu_custom_call.1} parent=11 // pred_check_branch
          %404 = sbr.rel (%p402) target = $region32
        $region31: #{tpu_custom_call.1} parent=11 // pred_region
          %s406 = ssub.s32 256, 256
          %407 = vsyncadd [#allocation15], %s406
          %s408 = sshll.u32 [#allocation14], 4
          %s409 = int_to_ptr.vmem [resolvable:$true] %s408
          %414 = dma.hbm_to_vmem [thread:$0]  %s7, 256, %s409, [#allocation15], 64, 64, 4
        $region32: #{tpu_custom_call.1} parent=11 // pred_fallthru
          _
        // Predicated region
        $region33: #{tpu_custom_call.1} parent=11 // pred_check
          %p415 = pneg %p255
        $region34: #{tpu_custom_call.1} parent=11 // pred_check_branch
          %417 = sbr.rel (%p415) target = $region36
        $region35: #{tpu_custom_call.1} parent=11 // pred_region
          %s419 = ssub.s32 16, 16
          %420 = vsyncadd [#allocation15], %s419
          %s422 = sshll.u32 [#allocation16], 4
          %s423 = int_to_ptr.vmem [resolvable:$true] %s422
          %425 = dma.hbm_to_vmem [thread:$0]  %s8, 16, %s423, [#allocation15]
        $region36: #{tpu_custom_call.1} parent=11 // pred_fallthru
          _
      $region12: #{tpu_custom_call.1} parent=5 // pred_fallthru
        _
      %p426 = scmp.lt.s32.totalorder %s33, 2
      // Predicated region
      $region37: #{tpu_custom_call.1} parent=5 // pred_check
        %p427 = pneg %p426
      $region38: #{tpu_custom_call.1} parent=5 // pred_check_branch
        %429 = sbr.rel (%p427) target = $region40
      $region39: #{tpu_custom_call.1} parent=5 // pred_region
        // Predicated region
        $region41: #{tpu_custom_call.1} parent=39 // pred_check
          %p430 = pneg %p67
        $region42: #{tpu_custom_call.1} parent=39 // pred_check_branch
          %432 = sbr.rel (%p430) target = $region44
        $region43: #{tpu_custom_call.1} parent=39 // pred_region
          %s433 = sand.u32 %s57, 1
          %s434 = scalar_lea.sflag [#allocation3], %s433
          %s435 = sand.u32 %s57, 1
          %s436 = smul.addr %s435, 8
          %s437 = scalar_lea.vmem [#allocation2], %s436
          %s439 = ssub.s32 128, 128
          %440 = vsyncadd %s434, %s439
          %s441 = sadd.s32 %s41, %s40
          %s442 = smul.addr %s441, 128
          %s443 = scalar_lea.hbm %s0, %s442
          %s445 = sshll.u32 %s437, 4
          %s446 = int_to_ptr.vmem [resolvable:$true] %s445
          %448 = dma.hbm_to_vmem [thread:$0]  %s443, 128, %s446, %s434
        $region44: #{tpu_custom_call.1} parent=39 // pred_fallthru
          _
        // Predicated region
        $region45: #{tpu_custom_call.1} parent=39 // pred_check
          %p449 = pneg %p95
        $region46: #{tpu_custom_call.1} parent=39 // pred_check_branch
          %451 = sbr.rel (%p449) target = $region48
        $region47: #{tpu_custom_call.1} parent=39 // pred_region
          %s452 = sand.u32 %s33, 1
          %s453 = scalar_lea.sflag [#allocation6], %s452
          %s454 = sand.u32 %s85, 1
          %s455 = smul.addr %s454, 8
          %s456 = scalar_lea.vmem [#allocation5], %s455
          %s458 = ssub.s32 128, 128
          %459 = vsyncadd %s453, %s458
          %s460 = sadd.s32 %s41, %s40
          %s461 = smul.addr %s460, 128
          %s462 = scalar_lea.hbm %s1, %s461
          %s464 = sshll.u32 %s456, 4
          %s465 = int_to_ptr.vmem [resolvable:$true] %s464
          %467 = dma.hbm_to_vmem [thread:$0]  %s462, 128, %s465, %s453
        $region48: #{tpu_custom_call.1} parent=39 // pred_fallthru
          _
        // Predicated region
        $region49: #{tpu_custom_call.1} parent=39 // pred_check
          %p468 = pneg %p123
        $region50: #{tpu_custom_call.1} parent=39 // pred_check_branch
          %470 = sbr.rel (%p468) target = $region52
        $region51: #{tpu_custom_call.1} parent=39 // pred_region
          %s471 = sand.u32 %s33, 1
          %s472 = scalar_lea.sflag [#allocation6], %s471
          %s473 = sand.u32 %s113, 1
          %s474 = smul.addr %s473, 8
          %s475 = scalar_lea.vmem [#allocation7], %s474
          %s477 = ssub.s32 128, 128
          %478 = vsyncadd %s472, %s477
          %s479 = sadd.s32 %s41, %s40
          %s480 = smul.addr %s479, 128
          %s481 = scalar_lea.hbm %s2, %s480
          %s483 = sshll.u32 %s475, 4
          %s484 = int_to_ptr.vmem [resolvable:$true] %s483
          %486 = dma.hbm_to_vmem [thread:$0]  %s481, 128, %s484, %s472
        $region52: #{tpu_custom_call.1} parent=39 // pred_fallthru
          _
      $region40: #{tpu_custom_call.1} parent=5 // pred_fallthru
        _
      %p487 = scmp.le.s32.totalorder 1, %s33
      %p488 = scmp.lt.s32.totalorder %s33, 3
      %p489 = pnand %p487, %p488
      %p490 = pneg %p489
      // Predicated region
      $region53: #{tpu_custom_call.1} parent=5 // pred_check
        _
      $region54: #{tpu_custom_call.1} parent=5 // pred_check_branch
        %492 = sbr.rel (%p489) target = $region56
      $region55: #{tpu_custom_call.1} parent=5 // pred_region
        %s493 = ssub.s32 %s33, 1
        %s494 = sand.u32 %s60, 1
        %s495 = scalar_lea.sflag [#allocation3], %s494
        %s496 = sand.u32 %s60, 1
        %s497 = smul.addr %s496, 8
        %s498 = scalar_lea.vmem [#allocation2], %s497
        // Predicated region
        $region57: #{tpu_custom_call.1} parent=55 // pred_check
          %p499 = pneg %p73
        $region58: #{tpu_custom_call.1} parent=55 // pred_check_branch
          %501 = sbr.rel (%p499) target = $region60
        $region59: #{tpu_custom_call.1} parent=55 // pred_region
          %502 = dma.done %s495, 128
        $region60: #{tpu_custom_call.1} parent=55 // pred_fallthru
          _
        %s503 = sand.u32 %s38, 1
        %s504 = scalar_lea.sflag [#allocation6], %s503
        %s505 = sand.u32 %s88, 1
        %s506 = smul.addr %s505, 8
        %s507 = scalar_lea.vmem [#allocation5], %s506
        // Predicated region
        $region61: #{tpu_custom_call.1} parent=55 // pred_check
          %p508 = pneg %p101
        $region62: #{tpu_custom_call.1} parent=55 // pred_check_branch
          %510 = sbr.rel (%p508) target = $region64
        $region63: #{tpu_custom_call.1} parent=55 // pred_region
          %511 = dma.done %s504, 128
        $region64: #{tpu_custom_call.1} parent=55 // pred_fallthru
          _
        %s512 = sand.u32 %s38, 1
        %s513 = scalar_lea.sflag [#allocation6], %s512
        %s514 = sand.u32 %s116, 1
        %s515 = smul.addr %s514, 8
        %s516 = scalar_lea.vmem [#allocation7], %s515
        // Predicated region
        $region65: #{tpu_custom_call.1} parent=55 // pred_check
          %p517 = pneg %p129
        $region66: #{tpu_custom_call.1} parent=55 // pred_check_branch
          %519 = sbr.rel (%p517) target = $region68
        $region67: #{tpu_custom_call.1} parent=55 // pred_region
          %520 = dma.done %s513, 128
        $region68: #{tpu_custom_call.1} parent=55 // pred_fallthru
          _
        // Predicated region
        $region69: #{tpu_custom_call.1} parent=55 // pred_check
          %p521 = pneg %p150
        $region70: #{tpu_custom_call.1} parent=55 // pred_check_branch
          %523 = sbr.rel (%p521) target = $region72
        $region71: #{tpu_custom_call.1} parent=55 // pred_region
          %524 = dma.done [#allocation9], 256
        $region72: #{tpu_custom_call.1} parent=55 // pred_fallthru
          _
        // Predicated region
        $region73: #{tpu_custom_call.1} parent=55 // pred_check
          %p525 = pneg %p171
        $region74: #{tpu_custom_call.1} parent=55 // pred_check_branch
          %527 = sbr.rel (%p525) target = $region76
        $region75: #{tpu_custom_call.1} parent=55 // pred_region
          %528 = dma.done [#allocation9], 16
        $region76: #{tpu_custom_call.1} parent=55 // pred_fallthru
          _
        // Predicated region
        $region77: #{tpu_custom_call.1} parent=55 // pred_check
          %p529 = pneg %p192
        $region78: #{tpu_custom_call.1} parent=55 // pred_check_branch
          %531 = sbr.rel (%p529) target = $region80
        $region79: #{tpu_custom_call.1} parent=55 // pred_region
          %532 = dma.done [#allocation12], 256
        $region80: #{tpu_custom_call.1} parent=55 // pred_fallthru
          _
        // Predicated region
        $region81: #{tpu_custom_call.1} parent=55 // pred_check
          %p533 = pneg %p213
        $region82: #{tpu_custom_call.1} parent=55 // pred_check_branch
          %535 = sbr.rel (%p533) target = $region84
        $region83: #{tpu_custom_call.1} parent=55 // pred_region
          %536 = dma.done [#allocation12], 16
        $region84: #{tpu_custom_call.1} parent=55 // pred_fallthru
          _
        // Predicated region
        $region85: #{tpu_custom_call.1} parent=55 // pred_check
          %p537 = pneg %p234
        $region86: #{tpu_custom_call.1} parent=55 // pred_check_branch
          %539 = sbr.rel (%p537) target = $region88
        $region87: #{tpu_custom_call.1} parent=55 // pred_region
          %540 = dma.done [#allocation15], 256
        $region88: #{tpu_custom_call.1} parent=55 // pred_fallthru
          _
        // Predicated region
        $region89: #{tpu_custom_call.1} parent=55 // pred_check
          %p541 = pneg %p255
        $region90: #{tpu_custom_call.1} parent=55 // pred_check_branch
          %543 = sbr.rel (%p541) target = $region92
        $region91: #{tpu_custom_call.1} parent=55 // pred_region
          %544 = dma.done [#allocation15], 16
        $region92: #{tpu_custom_call.1} parent=55 // pred_fallthru
          _
        %s545 = sand.u32 %s60, 1
        %s546 = scalar_lea.sflag [#allocation3], %s545
        %s547 = sand.u32 %s60, 1
        %s548 = smul.addr %s547, 8
        %s549 = scalar_lea.vmem [#allocation2], %s548
        %p550 = pneg %p73
        %p551 = pneg %p70
        %s552 = sand.u32 %s38, 1
        %s553 = scalar_lea.sflag [#allocation6], %s552
        %s554 = sand.u32 %s88, 1
        %s555 = smul.addr %s554, 8
        %s556 = scalar_lea.vmem [#allocation5], %s555
        %p557 = pneg %p101
        %p558 = pneg %p98
        %s559 = sand.u32 %s38, 1
        %s560 = scalar_lea.sflag [#allocation6], %s559
        %s561 = sand.u32 %s116, 1
        %s562 = smul.addr %s561, 8
        %s563 = scalar_lea.vmem [#allocation7], %s562
        %p564 = pneg %p129
        %p565 = pneg %p126
        %p566 = pneg %p150
        %p567 = pneg %p147
        %p568 = pneg %p171
        %p569 = pneg %p168
        %p570 = pneg %p192
        %p571 = pneg %p189
        %p572 = pneg %p213
        %p573 = pneg %p210
        %p574 = pneg %p234
        %p575 = pneg %p231
        %p576 = pneg %p255
        %p577 = pneg %p252
        %p578 = pneg %p283
        %p579 = pneg %p280
        %s580 = sand.u32 %s270, 1
        %s581 = scalar_lea.sflag [#allocation4], %s580
        %s582 = sand.u32 %s270, 1
        %s583 = smul.addr %s582, 4
        %s584 = scalar_lea.vmem [#allocation17], %s583
        %p585 = pneg %p311
        %p586 = pneg %p308
        %s587 = sand.u32 %s38, 1
        %s588 = scalar_lea.sflag [#allocation19], %s587
        %s589 = sand.u32 %s298, 1
        %s590 = smul.addr %s589, 4
        %s591 = scalar_lea.vmem [#allocation18], %s590
        %p592 = pneg %p339
        %p593 = pneg %p336
        %s594 = sand.u32 %s38, 1
        %s595 = scalar_lea.sflag [#allocation19], %s594
        %s596 = sand.u32 %s326, 1
        %s597 = smul.addr %s596, 4
        %s598 = scalar_lea.vmem [#allocation20], %s597
        %v600 = vld [vmem:[%s498] sm:$0xff]
        %v601 = vpack.c.bf16 %v600, %v600
        %v602 = vld [vmem:[%s507] sm:$0xff]
        %v603 = vpack.c.bf16 %v602, %v602
        %v604 = vld [vmem:[%s516] sm:$0xff]
        %v605 = vpack.c.bf16 %v604, %v604
        %v606 = vld [vmem:[#allocation8] sm:$0xf]
        %v607 = vld [vmem:[#allocation8 + $0x4] sm:$0xf]
        %v608 = vld [vmem:[#allocation8 + $0x8] sm:$0xf]
        %v609 = vld [vmem:[#allocation8 + $0xc] sm:$0xf]
        %v610 = vld [vmem:[#allocation10] sm:$0x1]
        %v612 = vlaneseq
        %v613 = vshrl.u32 %v612, 7
        %v614 = vsub.s32 0, %v613
        %v615 = vrot.slane %v610, %v614
        %v621 = vunpack.c.l.b16 %v606
        %v622 = vunpack.c.l.b16 %v607
        %v623 = vunpack.c.l.b16 %v608
        %v624 = vunpack.c.l.b16 %v609
        %v625 = vpack.c.b16 %v622, %v621
        %v626 = vpack.c.b16 %v624, %v623
        %vm629 = vcmask 261120
        %v631 = vsel %vm629, %v601, 0
        %633 = vmatprep.subr.bf16.mxu0 0
        %634 = vmatpush1.bf16.msra.mxu0 %v625
        %635 = vmatprep.subr.bf16.mxu0 0
        %636 = vmatpush1.bf16.msra.mxu0 %v626
        %637 = vmatprep.subr.bf16.mxu0 0
        %638 = vmatpush1.bf16.msra.mxu0 0
        %639 = vmatprep.subr.bf16.mxu0 0
        %640 = vmatpush1.bf16.msra.mxu0 0
        %641 = vmatprep.subr.bf16.mxu0 0
        %642 = vmatpush1.bf16.msra.mxu0 0
        %643 = vmatprep.subr.bf16.mxu0 0
        %644 = vmatpush1.bf16.msra.mxu0 0
        %645 = vmatprep.subr.bf16.mxu0 0
        %646 = vmatpush1.bf16.msra.mxu0 0
        %647 = vmatprep.subr.bf16.mxu0 0
        %648 = vmatpush1.bf16.msra.mxu0 0
        %649 = vmatprep.subr.bf16.mxu0 0
        %650 = vmatpush1.bf16.msra.mxu0 0
        %651 = vmatprep.subr.bf16.mxu0 0
        %652 = vmatpush1.bf16.msra.mxu0 0
        %653 = vmatprep.subr.bf16.mxu0 0
        %654 = vmatpush1.bf16.msra.mxu0 0
        %655 = vmatprep.subr.bf16.mxu0 0
        %656 = vmatpush1.bf16.msra.mxu0 0
        %657 = vmatprep.subr.bf16.mxu0 0
        %658 = vmatpush1.bf16.msra.mxu0 0
        %659 = vmatprep.subr.bf16.mxu0 0
        %660 = vmatpush1.bf16.msra.mxu0 0
        %661 = vmatprep.subr.bf16.mxu0 0
        %662 = vmatpush1.bf16.msra.mxu0 0
        %663 = vmatprep.subr.bf16.mxu0 0
        %664 = vmatpush1.bf16.msra.mxu0 0
        %665 = vmatprep.mubr.bf16.mxu0 0
        %666 = vmatmul.mubr.bf16.gmra.mrb[0].mxu0 %v631
        %v667 = vpop.f32.mrb[0].mxu0
        %v668 = vadd.f32 %v615, %v667
        %v669 = vpop.f32.mrb[0].mxu0
        %v670 = vpop.f32.mrb[0].mxu0
        %v671 = vpop.f32.mrb[0].mxu0
        %672 = vdwg.mxu0
        %v673 = vld [vmem:[#allocation11] sm:$0xf]
        %v674 = vld [vmem:[#allocation11 + $0x4] sm:$0xf]
        %v675 = vld [vmem:[#allocation11 + $0x8] sm:$0xf]
        %v676 = vld [vmem:[#allocation11 + $0xc] sm:$0xf]
        %v677 = vld [vmem:[#allocation13] sm:$0x1]
        %v679 = vlaneseq
        %v680 = vshrl.u32 %v679, 7
        %v681 = vsub.s32 0, %v680
        %v682 = vrot.slane %v677, %v681
        %v688 = vunpack.c.l.b16 %v673
        %v689 = vunpack.c.l.b16 %v674
        %v690 = vunpack.c.l.b16 %v675
        %v691 = vunpack.c.l.b16 %v676
        %v692 = vpack.c.b16 %v689, %v688
        %v693 = vpack.c.b16 %v691, %v690
        %v697 = vsel %vm629, %v603, 0
        %699 = vmatprep.subr.bf16.mxu0 0
        %700 = vmatpush1.bf16.msra.mxu0 %v692
        %701 = vmatprep.subr.bf16.mxu0 0
        %702 = vmatpush1.bf16.msra.mxu0 %v693
        %703 = vmatprep.subr.bf16.mxu0 0
        %704 = vmatpush1.bf16.msra.mxu0 0
        %705 = vmatprep.subr.bf16.mxu0 0
        %706 = vmatpush1.bf16.msra.mxu0 0
        %707 = vmatprep.subr.bf16.mxu0 0
        %708 = vmatpush1.bf16.msra.mxu0 0
        %709 = vmatprep.subr.bf16.mxu0 0
        %710 = vmatpush1.bf16.msra.mxu0 0
        %711 = vmatprep.subr.bf16.mxu0 0
        %712 = vmatpush1.bf16.msra.mxu0 0
        %713 = vmatprep.subr.bf16.mxu0 0
        %714 = vmatpush1.bf16.msra.mxu0 0
        %715 = vmatprep.subr.bf16.mxu0 0
        %716 = vmatpush1.bf16.msra.mxu0 0
        %717 = vmatprep.subr.bf16.mxu0 0
        %718 = vmatpush1.bf16.msra.mxu0 0
        %719 = vmatprep.subr.bf16.mxu0 0
        %720 = vmatpush1.bf16.msra.mxu0 0
        %721 = vmatprep.subr.bf16.mxu0 0
        %722 = vmatpush1.bf16.msra.mxu0 0
        %723 = vmatprep.subr.bf16.mxu0 0
        %724 = vmatpush1.bf16.msra.mxu0 0
        %725 = vmatprep.subr.bf16.mxu0 0
        %726 = vmatpush1.bf16.msra.mxu0 0
        %727 = vmatprep.subr.bf16.mxu0 0
        %728 = vmatpush1.bf16.msra.mxu0 0
        %729 = vmatprep.subr.bf16.mxu0 0
        %730 = vmatpush1.bf16.msra.mxu0 0
        %731 = vmatprep.mubr.bf16.mxu0 0
        %732 = vmatmul.mubr.bf16.gmra.mrb[0].mxu0 %v697
        %v733 = vpop.f32.mrb[0].mxu0
        %v734 = vadd.f32 %v682, %v733
        %v735 = vpop.f32.mrb[0].mxu0
        %v736 = vpop.f32.mrb[0].mxu0
        %v737 = vpop.f32.mrb[0].mxu0
        %738 = vdwg.mxu0
        %v739 = vld [vmem:[#allocation14] sm:$0xf]
        %v740 = vld [vmem:[#allocation14 + $0x4] sm:$0xf]
        %v741 = vld [vmem:[#allocation14 + $0x8] sm:$0xf]
        %v742 = vld [vmem:[#allocation14 + $0xc] sm:$0xf]
        %v743 = vld [vmem:[#allocation16] sm:$0x1]
        %v745 = vlaneseq
        %v746 = vshrl.u32 %v745, 7
        %v747 = vsub.s32 0, %v746
        %v748 = vrot.slane %v743, %v747
        %v754 = vunpack.c.l.b16 %v739
        %v755 = vunpack.c.l.b16 %v740
        %v756 = vunpack.c.l.b16 %v741
        %v757 = vunpack.c.l.b16 %v742
        %v758 = vpack.c.b16 %v755, %v754
        %v759 = vpack.c.b16 %v757, %v756
        %v763 = vsel %vm629, %v605, 0
        %765 = vmatprep.subr.bf16.mxu0 0
        %766 = vmatpush1.bf16.msra.mxu0 %v758
        %767 = vmatprep.subr.bf16.mxu0 0
        %768 = vmatpush1.bf16.msra.mxu0 %v759
        %769 = vmatprep.subr.bf16.mxu0 0
        %770 = vmatpush1.bf16.msra.mxu0 0
        %771 = vmatprep.subr.bf16.mxu0 0
        %772 = vmatpush1.bf16.msra.mxu0 0
        %773 = vmatprep.subr.bf16.mxu0 0
        %774 = vmatpush1.bf16.msra.mxu0 0
        %775 = vmatprep.subr.bf16.mxu0 0
        %776 = vmatpush1.bf16.msra.mxu0 0
        %777 = vmatprep.subr.bf16.mxu0 0
        %778 = vmatpush1.bf16.msra.mxu0 0
        %779 = vmatprep.subr.bf16.mxu0 0
        %780 = vmatpush1.bf16.msra.mxu0 0
        %781 = vmatprep.subr.bf16.mxu0 0
        %782 = vmatpush1.bf16.msra.mxu0 0
        %783 = vmatprep.subr.bf16.mxu0 0
        %784 = vmatpush1.bf16.msra.mxu0 0
        %785 = vmatprep.subr.bf16.mxu0 0
        %786 = vmatpush1.bf16.msra.mxu0 0
        %787 = vmatprep.subr.bf16.mxu0 0
        %788 = vmatpush1.bf16.msra.mxu0 0
        %789 = vmatprep.subr.bf16.mxu0 0
        %790 = vmatpush1.bf16.msra.mxu0 0
        %791 = vmatprep.subr.bf16.mxu0 0
        %792 = vmatpush1.bf16.msra.mxu0 0
        %793 = vmatprep.subr.bf16.mxu0 0
        %794 = vmatpush1.bf16.msra.mxu0 0
        %795 = vmatprep.subr.bf16.mxu0 0
        %796 = vmatpush1.bf16.msra.mxu0 0
        %797 = vmatprep.mubr.bf16.mxu0 0
        %798 = vmatmul.mubr.bf16.gmra.mrb[0].mxu0 %v763
        %v799 = vpop.f32.mrb[0].mxu0
        %v800 = vadd.f32 %v748, %v799
        %v801 = vpop.f32.mrb[0].mxu0
        %v802 = vpop.f32.mrb[0].mxu0
        %v803 = vpop.f32.mrb[0].mxu0
        %804 = vdwg.mxu0
        %v805 = vmul.f32 %v668, 0.35355338
        %v806 = vpack.c.bf16 %v805, %v805
        %vm807 = vcmask 257024
        %808 = vst.msk [vmem:[%s584] sm:$0xf] %vm807, %v806
        %v809 = vpack.c.bf16 %v734, %v734
        %810 = vst.msk [vmem:[%s591] sm:$0xf] %vm807, %v809
        %v811 = vpack.c.bf16 %v800, %v800
        %812 = vst.msk [vmem:[%s598] sm:$0xf] %vm807, %v811
        %s813 = sand.u32 %s270, 1
        %s814 = scalar_lea.sflag [#allocation4], %s813
        %s815 = sand.u32 %s270, 1
        %s816 = smul.addr %s815, 4
        %s817 = scalar_lea.vmem [#allocation17], %s816
        %s818 = sand.u32 %s38, 1
        %s819 = scalar_lea.sflag [#allocation19], %s818
        %s820 = sand.u32 %s298, 1
        %s821 = smul.addr %s820, 4
        %s822 = scalar_lea.vmem [#allocation18], %s821
        %s823 = sand.u32 %s38, 1
        %s824 = scalar_lea.sflag [#allocation19], %s823
        %s825 = sand.u32 %s326, 1
        %s826 = smul.addr %s825, 4
        %s827 = scalar_lea.vmem [#allocation20], %s826
        // Predicated region
        $region93: #{tpu_custom_call.1} parent=55 // pred_check
          %p828 = pneg %p280
        $region94: #{tpu_custom_call.1} parent=55 // pred_check_branch
          %830 = sbr.rel (%p828) target = $region96
        $region95: #{tpu_custom_call.1} parent=55 // pred_region
          %s832 = ssub.s32 64, 64
          %833 = vsyncadd %s814, %s832
          %s834 = sadd.s32 %s43, %s42
          %s835 = smul.addr %s834, 64
          %s836 = scalar_lea.hbm %s9, %s835
          %s838 = sshll.u32 %s817, 4
          %s839 = int_to_ptr.vmem [resolvable:$true] %s838
          %841 = dma.vmem_to_hbm [thread:$0]  %s839, 64, %s836, %s814
        $region96: #{tpu_custom_call.1} parent=55 // pred_fallthru
          _
        // Predicated region
        $region97: #{tpu_custom_call.1} parent=55 // pred_check
          %p842 = pneg %p308
        $region98: #{tpu_custom_call.1} parent=55 // pred_check_branch
          %844 = sbr.rel (%p842) target = $region100
        $region99: #{tpu_custom_call.1} parent=55 // pred_region
          %s846 = ssub.s32 64, 64
          %847 = vsyncadd %s819, %s846
          %s848 = sadd.s32 %s43, %s42
          %s849 = smul.addr %s848, 64
          %s850 = scalar_lea.hbm %s10, %s849
          %s852 = sshll.u32 %s822, 4
          %s853 = int_to_ptr.vmem [resolvable:$true] %s852
          %855 = dma.vmem_to_hbm [thread:$0]  %s853, 64, %s850, %s819
        $region100: #{tpu_custom_call.1} parent=55 // pred_fallthru
          _
        // Predicated region
        $region101: #{tpu_custom_call.1} parent=55 // pred_check
          %p856 = pneg %p336
        $region102: #{tpu_custom_call.1} parent=55 // pred_check_branch
          %858 = sbr.rel (%p856) target = $region104
        $region103: #{tpu_custom_call.1} parent=55 // pred_region
          %s860 = ssub.s32 64, 64
          %861 = vsyncadd %s824, %s860
          %s862 = sadd.s32 %s43, %s42
          %s863 = smul.addr %s862, 64
          %s864 = scalar_lea.hbm %s11, %s863
          %s866 = sshll.u32 %s827, 4
          %s867 = int_to_ptr.vmem [resolvable:$true] %s866
          %869 = dma.vmem_to_hbm [thread:$0]  %s867, 64, %s864, %s824
        $region104: #{tpu_custom_call.1} parent=55 // pred_fallthru
          _
      $region56: #{tpu_custom_call.1} parent=5 // pred_fallthru
        _
      %p870 = scmp.le.s32.totalorder 2, %s33
      // Predicated region
      $region105: #{tpu_custom_call.1} parent=5 // pred_check
        %p871 = pneg %p870
      $region106: #{tpu_custom_call.1} parent=5 // pred_check_branch
        %873 = sbr.rel (%p871) target = $region108
      $region107: #{tpu_custom_call.1} parent=5 // pred_region
        %s874 = ssub.s32 %s33, 2
        // Predicated region
        $region109: #{tpu_custom_call.1} parent=107 // pred_check
          %p875 = pneg %p286
        $region110: #{tpu_custom_call.1} parent=107 // pred_check_branch
          %877 = sbr.rel (%p875) target = $region112
        $region111: #{tpu_custom_call.1} parent=107 // pred_region
          %s878 = sand.u32 %s271, 1
          %s879 = scalar_lea.sflag [#allocation4], %s878
          %s880 = sand.u32 %s271, 1
          %s881 = smul.addr %s880, 4
          %s882 = scalar_lea.vmem [#allocation17], %s881
          %883 = dma.done %s879, 64
        $region112: #{tpu_custom_call.1} parent=107 // pred_fallthru
          _
        // Predicated region
        $region113: #{tpu_custom_call.1} parent=107 // pred_check
          %p884 = pneg %p314
        $region114: #{tpu_custom_call.1} parent=107 // pred_check_branch
          %886 = sbr.rel (%p884) target = $region116
        $region115: #{tpu_custom_call.1} parent=107 // pred_region
          %s887 = sand.u32 %s39, 1
          %s888 = scalar_lea.sflag [#allocation19], %s887
          %s889 = sand.u32 %s299, 1
          %s890 = smul.addr %s889, 4
          %s891 = scalar_lea.vmem [#allocation18], %s890
          %892 = dma.done %s888, 64
        $region116: #{tpu_custom_call.1} parent=107 // pred_fallthru
          _
        // Predicated region
        $region117: #{tpu_custom_call.1} parent=107 // pred_check
          %p893 = pneg %p342
        $region118: #{tpu_custom_call.1} parent=107 // pred_check_branch
          %895 = sbr.rel (%p893) target = $region120
        $region119: #{tpu_custom_call.1} parent=107 // pred_region
          %s896 = sand.u32 %s39, 1
          %s897 = scalar_lea.sflag [#allocation19], %s896
          %s898 = sand.u32 %s327, 1
          %s899 = smul.addr %s898, 4
          %s900 = scalar_lea.vmem [#allocation20], %s899
          %901 = dma.done %s897, 64
        $region120: #{tpu_custom_call.1} parent=107 // pred_fallthru
          _
      $region108: #{tpu_custom_call.1} parent=5 // pred_fallthru
        _
    $region6: #{tpu_custom_call.1} parent=1 // loop_footer
      %s37 = sadd.s32 1, %s33
    $region7: #{tpu_custom_call.1} parent=1 // loop_footer_branch
      %32 = sbr.rel target = $region3
    $region8: #{tpu_custom_call.1} parent=1 // loop_exit
      _
    %902 = vsyncpa [#allocation3], 1
    %s903 = scalar_lea.sflag [#allocation3], 1
    %904 = vsyncpa %s903, 1
    %905 = vsyncpa [#allocation6], 1
    %s906 = scalar_lea.sflag [#allocation6], 1
    %907 = vsyncpa %s906, 1
    %908 = vsyncpa [#allocation9], 1
    %909 = vsyncpa [#allocation12], 1
    %910 = vsyncpa [#allocation15], 1
    %911 = vsyncpa [#allocation4], 1
    %s912 = scalar_lea.sflag [#allocation4], 1
    %913 = vsyncpa %s912, 1
    %914 = vsyncpa [#allocation19], 1
    %s915 = scalar_lea.sflag [#allocation19], 1
    %916 = vsyncpa %s915, 1

</llo_original>
